<compile_context>
chip_gen: v5e
topology: v5e:2x2
jax: 0.10.0
libtpu: 0.0.40
codegen_flags: <defaults>
</compile_context>

<pallas_src>
import jax
import jax.numpy as jnp
from jax.experimental import pallas as pl
from jax.experimental.pallas import tpu as pltpu


def _make_se_kernel(inv_hw):
    """inv_hw = 1 / (true H*W), baked in as a compile-time constant (padding-safe)."""

    def kernel(x_ref, w1_ref, w2_ref, o_ref):
        # x_ref: (Bt, C, HWp)   w1_ref: (C, Cr)   w2_ref: (Cr, C)   o_ref: (Bt, C, HWp)

        # --- Squeeze: global average pool over the lane (spatial) dim. ------
        # Lane padding (if any) is zeros, so sum * 1/HW_true is the exact mean.
        y = jnp.sum(x_ref[...].astype(jnp.float32), axis=-1) * inv_hw      # (Bt, C)

        # --- Excitation: FC -> ReLU -> FC -> Sigmoid, kept OFF the MXU. -----
        # C x Cr (e.g. 32 x 2) would pad ~99% of an MXU tile; VPU broadcast-mul
        # + sublane reduce avoids the serialized systolic round trip.
        h = jnp.maximum(
            jnp.sum(y[:, :, None] * w1_ref[...][None, :, :], axis=1), 0.0)  # (Bt, Cr)
        s = jnp.sum(h[:, :, None] * w2_ref[...][None, :, :], axis=1)        # (Bt, C)
        gate = jax.nn.sigmoid(s)            # exact sigmoid; cost fully hidden by DMA

        # --- Scale: broadcast per-(b, c) gate over spatial lanes. -----------
        # Re-read x_ref here (don't hold the big tile live across the MLP) to
        # bound vreg live ranges / avoid spill traffic at large block_b.
        o_ref[...] = (x_ref[...].astype(jnp.float32)
                      * gate[:, :, None]).astype(o_ref.dtype)

    return kernel


def _tpu_topology():
    """(vmem_capacity_bytes, tensorcores_per_chip) with conservative fallbacks."""
    vmem_cap = 64 * 1024 * 1024      # conservative default = v7x physical VMEM
    num_tc = 1
    try:
        info = pltpu.get_tpu_info()
        vmem_cap = int(info.vmem_capacity_bytes)
    except Exception:
        pass
    try:
        kind = jax.devices()[0].device_kind.lower()
        if "v7" in kind:             # v7x: 2 TensorCores per chip (megacore split)
            num_tc = 2
    except Exception:
        pass
    return vmem_cap, num_tc


def _pick_block_b(B, bytes_per_batch, vmem_cap, num_tc):
    """Largest batch tile whose double-buffered in+out traffic fits VMEM."""
    # in + out, each double-buffered -> ~4x block bytes resident. Cap block at
    # 16 MiB (v5e/v6e, 128 MiB VMEM) or vmem_cap/8 (v7x -> 8 MiB), leaving
    # headroom for weights / scratch.
    per_block_limit = min(16 * 1024 * 1024, vmem_cap // 8)
    block_b = max(1, min(B, per_block_limit // max(1, bytes_per_batch)))

    if num_tc >= 2 and B >= num_tc:
        # Only split for megacore when there actually are 2 TCs.
        block_b = min(block_b, max(1, B // num_tc))

    # Snap to a divisor of B (perf-only: avoids a ragged tail block).
    while B % block_b:
        block_b -= 1

    if num_tc >= 2:
        # Prefer a grid length that is a multiple of num_tc so no TC idles on
        # the last wave of this mem-bound kernel.
        bb = block_b
        while bb >= 1 and not (B % bb == 0 and (B // bb) % num_tc == 0):
            bb -= 1
        if bb >= 1:
            block_b = bb
    return max(1, block_b)


def se_layer(x_nchw, w1, w2, *, block_b=None):
    """Squeeze-and-Excitation forward.

    x_nchw: (B, C, H, W) float32 or bfloat16
    w1:     (C, C//r)    == fc1.weight.T  (no bias)
    w2:     (C//r, C)    == fc2.weight.T  (no bias)
    """
    B, C, H, W = x_nchw.shape
    HW = H * W
    Cr = w1.shape[1]
    assert w1.shape == (C, Cr) and w2.shape == (Cr, C)

    # Lane-dense layout: pad the spatial (lane) dim to a multiple of 128 so
    # stores stay unmasked (biggest measured single lever). Padding is zeros,
    # so the mean (divided by the true HW) is unaffected; padded lanes are
    # sliced off at the end.
    HWp = HW if HW % 128 == 0 else ((HW + 127) // 128) * 128
    x_flat = x_nchw.reshape(B, C, HW)
    if HWp != HW:
        x_flat = jnp.pad(x_flat, ((0, 0), (0, 0), (0, HWp - HW)))

    itemsize = x_flat.dtype.itemsize
    bytes_per_batch = C * HWp * itemsize

    vmem_cap, num_tc = _tpu_topology()
    if block_b is None:
        block_b = _pick_block_b(B, bytes_per_batch, vmem_cap, num_tc)
    grid = (B // block_b,)

    block_bytes = block_b * bytes_per_batch
    # Raise the scoped-VMEM cap to actually cover the sized blocks (+headroom),
    # but never above ~3/4 of physical VMEM.
    vmem_limit = int(min(vmem_cap * 3 // 4,
                         max(32 * 1024 * 1024, 6 * block_bytes)))

    cost = pl.CostEstimate(
        flops=int(3 * B * C * HW + 4 * B * C * Cr),
        transcendentals=int(B * C),
        bytes_accessed=int(2 * B * C * HWp * itemsize
                           + 2 * C * Cr * w1.dtype.itemsize),
    )

    out_flat = pl.pallas_call(
        _make_se_kernel(1.0 / HW),
        out_shape=jax.ShapeDtypeStruct((B, C, HWp), x_nchw.dtype),
        grid=grid,
        in_specs=[
            pl.BlockSpec((block_b, C, HWp), lambda b: (b, 0, 0)),
            pl.BlockSpec((C, Cr), lambda b: (0, 0)),
            pl.BlockSpec((Cr, C), lambda b: (0, 0)),
        ],
        out_specs=pl.BlockSpec((block_b, C, HWp), lambda b: (b, 0, 0)),
        input_output_aliases={0: 0},         # x -> out: no extra HBM allocation
        cost_estimate=cost,
        compiler_params=pltpu.CompilerParams(
            dimension_semantics=("parallel",),   # megacore split on v7x
            vmem_limit_bytes=vmem_limit,
        ),
    )(x_flat, w1, w2)

    if HWp != HW:
        out_flat = out_flat[:, :, :HW]
    # TODO(synk): for end-to-end wins at this size, fuse SE into the producing
    # conv's epilogue; the kernel itself is already HBM-/launch-bound.
    return out_flat.reshape(B, C, H, W)


def _reference(x_nchw, w1, w2):
    y = jnp.mean(x_nchw, axis=(2, 3))                 # (B, C)
    h = jnp.maximum(y @ w1, 0.0)
    s = jax.nn.sigmoid(h @ w2)
    return x_nchw * s[:, :, None, None]


if __name__ == "__main__":
    B, C, H, W = 2, 32, 16, 16
    reduction = 16
    Cr = C // reduction

    key = jax.random.PRNGKey(0)
    kx, k1, k2 = jax.random.split(key, 3)

    x = jax.random.normal(kx, (B, C, H, W), dtype=jnp.float32)
    # Deterministic synthetic weights (Linear layers have no bias).
    # w1 plays the role of W1.T (shape C x C//r), w2 of W2.T (shape C//r x C).
    bound1 = 1.0 / (C ** 0.5)
    bound2 = 1.0 / (Cr ** 0.5)
    w1 = jax.random.uniform(k1, (C, Cr), jnp.float32, -bound1, bound1)
    w2 = jax.random.uniform(k2, (Cr, C), jnp.float32, -bound2, bound2)

    out = jax.block_until_ready(se_layer(x, w1, w2))
    ref = _reference(x, w1, w2)

    assert out.shape == (B, C, H, W)
    # Exact sigmoid now -> tight tolerance (only f32 reduction-order noise).
    assert jnp.allclose(out, ref, atol=1e-5, rtol=1e-5), (
        float(jnp.max(jnp.abs(out - ref))))

    print("KERNEL_OK")
</pallas_src>

<mosaic_0001>
module attributes {stable_mosaic.version = 11 : i64} {
  func.func @kernel(%arg0: i32, %arg1: memref<2x32x256xf32, #tpu.memory_space<vmem>>, %arg2: memref<32x2xf32, #tpu.memory_space<vmem>>, %arg3: memref<2x32xf32, #tpu.memory_space<vmem>>, %arg4: memref<2x32x256xf32, #tpu.memory_space<vmem>>) attributes {dimension_semantics = [#tpu.dimension_semantics<parallel>], iteration_bounds = array<i64: 1>, scalar_prefetch = 0 : i64, scratch_operands = 0 : i64, tpu.core_type = #tpu.core_type<tc>, window_params = [{transform_indices = @transform_0, window_bounds = array<i64: 2, 32, 256>}, {pipeline_mode = #tpu.pipeline_mode<synchronous>, transform_indices = @transform_1, window_bounds = array<i64: 32, 2>}, {pipeline_mode = #tpu.pipeline_mode<synchronous>, transform_indices = @transform_2, window_bounds = array<i64: 2, 32>}, {transform_indices = @transform_3, window_bounds = array<i64: 2, 32, 256>}]} {
    %c0 = arith.constant 0 : index
    %c0_0 = arith.constant 0 : index
    %c0_1 = arith.constant 0 : index
    %0 = vector.load %arg1[%c0, %c0_0, %c0_1] : memref<2x32x256xf32, #tpu.memory_space<vmem>>, vector<2x32x256xf32>
    %cst = arith.constant dense<0.000000e+00> : vector<2x32xf32>
    %1 = vector.multi_reduction <add>, %0, %cst [2] : vector<2x32x256xf32> to vector<2x32xf32>
    %cst_2 = arith.constant 3.906250e-03 : f32
    %2 = vector.broadcast %cst_2 : f32 to vector<2x32xf32>
    %3 = arith.mulf %1, %2 : vector<2x32xf32>
    %4 = vector.shape_cast %3 : vector<2x32xf32> to vector<2x32x1xf32>
    %c0_3 = arith.constant 0 : index
    %c0_4 = arith.constant 0 : index
    %5 = vector.load %arg2[%c0_3, %c0_4] : memref<32x2xf32, #tpu.memory_space<vmem>>, vector<32x2xf32>
    %6 = vector.shape_cast %5 : vector<32x2xf32> to vector<1x32x2xf32>
    %7 = vector.broadcast %4 : vector<2x32x1xf32> to vector<2x32x2xf32>
    %8 = vector.broadcast %6 : vector<1x32x2xf32> to vector<2x32x2xf32>
    %9 = arith.mulf %7, %8 : vector<2x32x2xf32>
    %cst_5 = arith.constant dense<0.000000e+00> : vector<2x2xf32>
    %10 = vector.multi_reduction <add>, %9, %cst_5 [1] : vector<2x32x2xf32> to vector<2x2xf32>
    %cst_6 = arith.constant 0.000000e+00 : f32
    %11 = vector.broadcast %cst_6 : f32 to vector<2x2xf32>
    %12 = arith.maximumf %10, %11 : vector<2x2xf32>
    %13 = vector.shape_cast %12 : vector<2x2xf32> to vector<2x2x1xf32>
    %c0_7 = arith.constant 0 : index
    %c0_8 = arith.constant 0 : index
    %14 = vector.load %arg3[%c0_7, %c0_8] : memref<2x32xf32, #tpu.memory_space<vmem>>, vector<2x32xf32>
    %15 = vector.shape_cast %14 : vector<2x32xf32> to vector<1x2x32xf32>
    %16 = vector.broadcast %13 : vector<2x2x1xf32> to vector<2x2x32xf32>
    %17 = vector.broadcast %15 : vector<1x2x32xf32> to vector<2x2x32xf32>
    %18 = arith.mulf %16, %17 : vector<2x2x32xf32>
    %cst_9 = arith.constant dense<0.000000e+00> : vector<2x32xf32>
    %19 = vector.multi_reduction <add>, %18, %cst_9 [1] : vector<2x2x32xf32> to vector<2x32xf32>
    %20 = arith.negf %19 : vector<2x32xf32>
    %21 = math.exp %20 : vector<2x32xf32>
    %cst_10 = arith.constant 1.000000e+00 : f32
    %22 = vector.broadcast %cst_10 : f32 to vector<2x32xf32>
    %23 = arith.addf %22, %21 : vector<2x32xf32>
    %24 = arith.divf %22, %23 : vector<2x32xf32>
    %c0_11 = arith.constant 0 : index
    %c0_12 = arith.constant 0 : index
    %c0_13 = arith.constant 0 : index
    %25 = vector.load %arg1[%c0_11, %c0_12, %c0_13] : memref<2x32x256xf32, #tpu.memory_space<vmem>>, vector<2x32x256xf32>
    %26 = vector.shape_cast %24 : vector<2x32xf32> to vector<2x32x1xf32>
    %27 = vector.broadcast %26 : vector<2x32x1xf32> to vector<2x32x256xf32>
    %28 = arith.mulf %25, %27 : vector<2x32x256xf32>
    %c0_14 = arith.constant 0 : index
    %c0_15 = arith.constant 0 : index
    %c0_16 = arith.constant 0 : index
    %29 = vector.load %arg4[%c0_14, %c0_15, %c0_16] : memref<2x32x256xf32, #tpu.memory_space<vmem>>, vector<2x32x256xf32>
    tpu.vector_store %arg4[%c0_14, %c0_15, %c0_16], %28 {strides = array<i32>} : memref<2x32x256xf32, #tpu.memory_space<vmem>>, vector<2x32x256xf32>,
    return
  }
  func.func @transform_0(%arg0: i32) -> (i32, i32, i32) {
    %c0_i32 = arith.constant 0 : i32
    %c0_i32_0 = arith.constant 0 : i32
    %c0_i32_1 = arith.constant 0 : i32
    return %arg0, %c0_i32, %c0_i32_0 : i32, i32, i32
  }
  func.func @transform_1(%arg0: i32) -> (i32, i32) {
    %c0_i32 = arith.constant 0 : i32
    %c0_i32_0 = arith.constant 0 : i32
    %c0_i32_1 = arith.constant 0 : i32
    return %c0_i32, %c0_i32_0 : i32, i32
  }
  func.func @transform_2(%arg0: i32) -> (i32, i32) {
    %c0_i32 = arith.constant 0 : i32
    %c0_i32_0 = arith.constant 0 : i32
    %c0_i32_1 = arith.constant 0 : i32
    return %c0_i32, %c0_i32_0 : i32, i32
  }
  func.func @transform_3(%arg0: i32) -> (i32, i32, i32) {
    %c0_i32 = arith.constant 0 : i32
    %c0_i32_0 = arith.constant 0 : i32
    %c0_i32_1 = arith.constant 0 : i32
    return %arg0, %c0_i32, %c0_i32_0 : i32, i32, i32
  }
}

</mosaic_0001>

<llo_original>
// kernel: tpu_custom_call.1
$region0: #{tpu_custom_call.1}
  #allocation0 [shape = 'u32[]', space=smem, size = 0x4, offset = 0x4, fixed_abs, tag = 'smem constant byte address 0x4 - core index']
  #allocation1 [shape = 'u32[72,128]{1,0:T(1,128)}', space=vmem, size = 0x9000, scoped, tag = 'internal scratch']
  %s0 = inlined_call_operand.hbm [shape: f32[2,32,256], index: 0, kind: input, shape index: {}, may-alias: {0,3}]
  %s1 = inlined_call_operand.vmem [shape: f32[32,2], index: 1, kind: input, shape index: {}]
  %s2 = inlined_call_operand.vmem [shape: f32[2,32], index: 2, kind: input, shape index: {}]
  %s3 = inlined_call_operand.hbm [shape: f32[2,32,256], index: 3, kind: output, shape index: {}, may-alias: {0,3}]
  %s4 = sld [smem:[#allocation0]]
  $region26: #{tpu_custom_call.1} parent=0
    _
  %s6 = ssub.s32 1, %s4
  %s7 = scalar_select 0, %s6, %s4
  $region1: #{tpu_custom_call.1} parent=0
    #allocation2 [shape = 'u8[65536]{0}', space=vmem, size = 0x10000, scoped, tag = 'input window, operand 0, single buffered']
    #allocation3 [shape = 's32[1]{0}', space=sflag, size = 0x4, scoped, tag = 'scoped memory for tpu_custom_call.1']
    #allocation4 [shape = 's32[1]{0}', space=sflag, size = 0x4, scoped, tag = 'scoped memory for tpu_custom_call.1']
    #allocation5 [shape = 'u8[65536]{0}', space=vmem, size = 0x10000, scoped, tag = 'output window, operand 0, single buffered']
    %8 = vsyncpa [#allocation3], 0
    %9 = vsyncpa [#allocation4], 0
    // Predicated region
    $region2: #{tpu_custom_call.1} parent=1 // pred_check
      _
    $region3: #{tpu_custom_call.1} parent=1 // pred_check_branch
      %11 = sbr.rel (0) target = $region5
    $region4: #{tpu_custom_call.1} parent=1 // pred_region
      %13 = vsyncadd [#allocation3], 0
      %s14 = sshll.u32 %s0, 4
      %s15 = int_to_ptr.hbm [resolvable:$true] %s14
      %s16 = sshll.u32 [#allocation2], 4
      %s17 = int_to_ptr.vmem [resolvable:$true] %s16
      %22 = dma.hbm_to_vmem [thread:$0]  %s15, 2048, %s17, [#allocation3], 256, 256, 16
    $region5: #{tpu_custom_call.1} parent=1 // pred_fallthru
      _
    // Predicated region
    $region6: #{tpu_custom_call.1} parent=1 // pred_check
      _
    $region7: #{tpu_custom_call.1} parent=1 // pred_check_branch
      %24 = sbr.rel (0) target = $region9
    $region8: #{tpu_custom_call.1} parent=1 // pred_region
      _
    $region9: #{tpu_custom_call.1} parent=1 // pred_fallthru
      _
    // Predicated region
    $region10: #{tpu_custom_call.1} parent=1 // pred_check
      _
    $region11: #{tpu_custom_call.1} parent=1 // pred_check_branch
      %26 = sbr.rel (0) target = $region13
    $region12: #{tpu_custom_call.1} parent=1 // pred_region
      _
    $region13: #{tpu_custom_call.1} parent=1 // pred_fallthru
      _
    // Predicated region
    $region14: #{tpu_custom_call.1} parent=1 // pred_check
      _
    $region15: #{tpu_custom_call.1} parent=1 // pred_check_branch
      %28 = sbr.rel (0) target = $region17
    $region16: #{tpu_custom_call.1} parent=1 // pred_region
      %30 = dma.done [#allocation3], 2048
    $region17: #{tpu_custom_call.1} parent=1 // pred_fallthru
      _
    %v31 = vld [vmem:[#allocation2] sm:$0xff]
    %v32 = vld [vmem:[#allocation2 + $0x8] sm:$0xff]
    %v33 = vld [vmem:[#allocation2 + $0x10] sm:$0xff]
    %v34 = vld [vmem:[#allocation2 + $0x18] sm:$0xff]
    %v35 = vld [vmem:[#allocation2 + $0x20] sm:$0xff]
    %v36 = vld [vmem:[#allocation2 + $0x28] sm:$0xff]
    %v37 = vld [vmem:[#allocation2 + $0x30] sm:$0xff]
    %v38 = vld [vmem:[#allocation2 + $0x38] sm:$0xff]
    %v39 = vld [vmem:[#allocation2 + $0x40] sm:$0xff]
    %v40 = vld [vmem:[#allocation2 + $0x48] sm:$0xff]
    %v41 = vld [vmem:[#allocation2 + $0x50] sm:$0xff]
    %v42 = vld [vmem:[#allocation2 + $0x58] sm:$0xff]
    %v43 = vld [vmem:[#allocation2 + $0x60] sm:$0xff]
    %v44 = vld [vmem:[#allocation2 + $0x68] sm:$0xff]
    %v45 = vld [vmem:[#allocation2 + $0x70] sm:$0xff]
    %v46 = vld [vmem:[#allocation2 + $0x78] sm:$0xff]
    %v47 = vadd.f32 %v31, %v32
    %48 = vadd.xlane.f32.xlu0 %v47
    %v49 = vpop.xlane.xlu0 %48
    %v50 = vadd.f32 %v33, %v34
    %51 = vadd.xlane.f32.xlu0 %v50
    %v52 = vpop.xlane.xlu0 %51
    %v53 = vadd.f32 %v35, %v36
    %54 = vadd.xlane.f32.xlu0 %v53
    %v55 = vpop.xlane.xlu0 %54
    %v56 = vadd.f32 %v37, %v38
    %57 = vadd.xlane.f32.xlu0 %v56
    %v58 = vpop.xlane.xlu0 %57
    %v59 = vadd.f32 %v39, %v40
    %60 = vadd.xlane.f32.xlu0 %v59
    %v61 = vpop.xlane.xlu0 %60
    %v62 = vadd.f32 %v41, %v42
    %63 = vadd.xlane.f32.xlu0 %v62
    %v64 = vpop.xlane.xlu0 %63
    %v65 = vadd.f32 %v43, %v44
    %66 = vadd.xlane.f32.xlu0 %v65
    %v67 = vpop.xlane.xlu0 %66
    %v68 = vadd.f32 %v45, %v46
    %69 = vadd.xlane.f32.xlu0 %v68
    %v70 = vpop.xlane.xlu0 %69
    %v71 = vmul.f32 %v49, 0.00390625
    %v72 = vmul.f32 %v52, 0.00390625
    %v73 = vmul.f32 %v55, 0.00390625
    %v74 = vmul.f32 %v58, 0.00390625
    %v75 = vmul.f32 %v61, 0.00390625
    %v76 = vmul.f32 %v64, 0.00390625
    %v77 = vmul.f32 %v67, 0.00390625
    %v78 = vmul.f32 %v70, 0.00390625
    %v79 = vld [vmem:[%s1] sm:$0xff]
    %v80 = vld [vmem:[%s1 + $0x8] sm:$0xff]
    %v81 = vld [vmem:[%s1 + $0x10] sm:$0xff]
    %v82 = vld [vmem:[%s1 + $0x18] sm:$0xff]
    %v83 = vmul.f32 %v71, %v79
    %v84 = vmul.f32 %v72, %v80
    %v85 = vmul.f32 %v73, %v81
    %v86 = vmul.f32 %v74, %v82
    %v87 = vmul.f32 %v75, %v79
    %v88 = vmul.f32 %v76, %v80
    %v89 = vmul.f32 %v77, %v81
    %v90 = vmul.f32 %v78, %v82
    %vm91 = vcmask 15360
    %v92 = vsel %vm91, %v83, 0.0
    %v93 = vsel %vm91, %v84, 0.0
    %v94 = vadd.f32 %v92, %v93
    %v95 = vsel %vm91, %v85, 0.0
    %v96 = vadd.f32 %v94, %v95
    %v97 = vsel %vm91, %v86, 0.0
    %v98 = vadd.f32 %v96, %v97
    %v99 = vrot.slane %v98, 4
    %v100 = vadd.f32 %v98, %v99
    %v101 = vrot.slane %v100, 2
    %v102 = vadd.f32 %v100, %v101
    %v103 = vrot.slane %v102, 1
    %v104 = vadd.f32 %v102, %v103
    %v105 = vsel %vm91, %v87, 0.0
    %v106 = vsel %vm91, %v88, 0.0
    %v107 = vadd.f32 %v105, %v106
    %v108 = vsel %vm91, %v89, 0.0
    %v109 = vadd.f32 %v107, %v108
    %v110 = vsel %vm91, %v90, 0.0
    %v111 = vadd.f32 %v109, %v110
    %v112 = vrot.slane %v111, 4
    %v113 = vadd.f32 %v111, %v112
    %v114 = vrot.slane %v113, 2
    %v115 = vadd.f32 %v113, %v114
    %v116 = vrot.slane %v115, 1
    %v117 = vadd.f32 %v115, %v116
    %v118 = vmax.f32 %v104, 0.0
    %v119 = vmax.f32 %v117, 0.0
    %v120 = vlaneseq
    %v121 = vshrl.u32 %v120, 7
    %123 = vset.pattern.permute.xlu0 %v121
    %124 = vperm.xlu0 %123, %v118
    %v125 = vpop.permute.xlu0 %124
    %v126 = vlaneseq
    %v127 = vshrl.u32 %v126, 7
    %129 = vset.pattern.permute.xlu0 %v127
    %130 = vperm.xlu0 %129, %v119
    %v131 = vpop.permute.xlu0 %130
    %v132 = vld [vmem:[%s2] sm:$0x3]
    %v133 = vmul.f32 %v125, %v132
    %v134 = vmul.f32 %v131, %v132
    %vm135 = vcmask 254976
    %v136 = vsel %vm135, %v133, 0.0
    %v137 = vrot.slane %v136, 4
    %v138 = vadd.f32 %v136, %v137
    %v139 = vrot.slane %v138, 2
    %v140 = vadd.f32 %v138, %v139
    %v141 = vrot.slane %v140, 1
    %v142 = vadd.f32 %v140, %v141
    %v143 = vsel %vm135, %v134, 0.0
    %v144 = vrot.slane %v143, 4
    %v145 = vadd.f32 %v143, %v144
    %v146 = vrot.slane %v145, 2
    %v147 = vadd.f32 %v145, %v146
    %v148 = vrot.slane %v147, 1
    %v149 = vadd.f32 %v147, %v148
    %v150 = vxor.u32 %v142, 2147483648
    %v151 = vxor.u32 %v149, 2147483648
    %v152 = vmul.f32 %v150, 1.442695
    %v153 = vpow.pop %v152
    %v154 = vmul.f32 %v151, 1.442695
    %v155 = vpow.pop %v154
    %v156 = vadd.f32 %v153, 1.0
    %v157 = vadd.f32 %v155, 1.0
    %v158 = vrcp.pop %v156
    %v159 = vmul.f32 %v156, %v158
    %v160 = vsub.f32 1.0, %v159
    %v161 = vmul.f32 %v158, %v160
    %v162 = vadd.f32 %v158, %v161
    %vm163 = vweird.f32 %v156
    %vm164 = vweird.f32 %v158
    %vm165 = vmor %vm163, %vm164
    %v166 = vsel %vm165, %v158, %v162
    %v167 = vand.u32 2147483647, %v156
    %vm168 = vcmp.eq.f32.partialorder %v167, 8.507059e+37
    %v169 = vand.u32 %v156, 2147483648
    %v170 = vor.u32 1.1754944e-38, %v169
    %v171 = vsel %vm168, %v170, %v166
    %v172 = vmul.f32 1.0, %v171
    %v173 = vrcp.pop %v157
    %v174 = vmul.f32 %v157, %v173
    %v175 = vsub.f32 1.0, %v174
    %v176 = vmul.f32 %v173, %v175
    %v177 = vadd.f32 %v173, %v176
    %vm178 = vweird.f32 %v157
    %vm179 = vweird.f32 %v173
    %vm180 = vmor %vm178, %vm179
    %v181 = vsel %vm180, %v173, %v177
    %v182 = vand.u32 2147483647, %v157
    %vm183 = vcmp.eq.f32.partialorder %v182, 8.507059e+37
    %v184 = vand.u32 %v157, 2147483648
    %v185 = vor.u32 1.1754944e-38, %v184
    %v186 = vsel %vm183, %v185, %v181
    %v187 = vmul.f32 1.0, %v186
    %v188 = vlaneseq
    %v189 = vshrl.u32 %v188, 7
    %191 = vset.pattern.permute.xlu0 %v189
    %192 = vperm.xlu0 %191, %v172
    %v193 = vpop.permute.xlu0 %192
    %v194 = vlaneseq
    %v195 = vshrl.u32 %v194, 7
    %v196 = vadd.s32 %v195, 8
    %197 = vset.pattern.permute.xlu0 %v196
    %198 = vperm.xlu0 %197, %v172
    %v199 = vpop.permute.xlu0 %198
    %v200 = vlaneseq
    %v201 = vshrl.u32 %v200, 7
    %v202 = vadd.s32 %v201, 16
    %203 = vset.pattern.permute.xlu0 %v202
    %204 = vperm.xlu0 %203, %v172
    %v205 = vpop.permute.xlu0 %204
    %v206 = vlaneseq
    %v207 = vshrl.u32 %v206, 7
    %v208 = vadd.s32 %v207, 24
    %209 = vset.pattern.permute.xlu0 %v208
    %210 = vperm.xlu0 %209, %v172
    %v211 = vpop.permute.xlu0 %210
    %v212 = vlaneseq
    %v213 = vshrl.u32 %v212, 7
    %215 = vset.pattern.permute.xlu0 %v213
    %216 = vperm.xlu0 %215, %v187
    %v217 = vpop.permute.xlu0 %216
    %v218 = vlaneseq
    %v219 = vshrl.u32 %v218, 7
    %v220 = vadd.s32 %v219, 8
    %221 = vset.pattern.permute.xlu0 %v220
    %222 = vperm.xlu0 %221, %v187
    %v223 = vpop.permute.xlu0 %222
    %v224 = vlaneseq
    %v225 = vshrl.u32 %v224, 7
    %v226 = vadd.s32 %v225, 16
    %227 = vset.pattern.permute.xlu0 %v226
    %228 = vperm.xlu0 %227, %v187
    %v229 = vpop.permute.xlu0 %228
    %v230 = vlaneseq
    %v231 = vshrl.u32 %v230, 7
    %v232 = vadd.s32 %v231, 24
    %233 = vset.pattern.permute.xlu0 %v232
    %234 = vperm.xlu0 %233, %v187
    %v235 = vpop.permute.xlu0 %234
    %v236 = vmul.f32 %v31, %v193
    %v237 = vmul.f32 %v32, %v193
    %v238 = vmul.f32 %v33, %v199
    %v239 = vmul.f32 %v34, %v199
    %v240 = vmul.f32 %v35, %v205
    %v241 = vmul.f32 %v36, %v205
    %v242 = vmul.f32 %v37, %v211
    %v243 = vmul.f32 %v38, %v211
    %v244 = vmul.f32 %v39, %v217
    %v245 = vmul.f32 %v40, %v217
    %v246 = vmul.f32 %v41, %v223
    %v247 = vmul.f32 %v42, %v223
    %v248 = vmul.f32 %v43, %v229
    %v249 = vmul.f32 %v44, %v229
    %v250 = vmul.f32 %v45, %v235
    %v251 = vmul.f32 %v46, %v235
    %252 = vst [vmem:[#allocation5] sm:$0xff] %v236
    %253 = vst [vmem:[#allocation5 + $0x8] sm:$0xff] %v237
    %254 = vst [vmem:[#allocation5 + $0x10] sm:$0xff] %v238
    %255 = vst [vmem:[#allocation5 + $0x18] sm:$0xff] %v239
    %256 = vst [vmem:[#allocation5 + $0x20] sm:$0xff] %v240
    %257 = vst [vmem:[#allocation5 + $0x28] sm:$0xff] %v241
    %258 = vst [vmem:[#allocation5 + $0x30] sm:$0xff] %v242
    %259 = vst [vmem:[#allocation5 + $0x38] sm:$0xff] %v243
    %260 = vst [vmem:[#allocation5 + $0x40] sm:$0xff] %v244
    %261 = vst [vmem:[#allocation5 + $0x48] sm:$0xff] %v245
    %262 = vst [vmem:[#allocation5 + $0x50] sm:$0xff] %v246
    %263 = vst [vmem:[#allocation5 + $0x58] sm:$0xff] %v247
    %264 = vst [vmem:[#allocation5 + $0x60] sm:$0xff] %v248
    %265 = vst [vmem:[#allocation5 + $0x68] sm:$0xff] %v249
    %266 = vst [vmem:[#allocation5 + $0x70] sm:$0xff] %v250
    %267 = vst [vmem:[#allocation5 + $0x78] sm:$0xff] %v251
    // Predicated region
    $region18: #{tpu_custom_call.1} parent=1 // pred_check
      _
    $region19: #{tpu_custom_call.1} parent=1 // pred_check_branch
      %269 = sbr.rel (0) target = $region21
    $region20: #{tpu_custom_call.1} parent=1 // pred_region
      %271 = vsyncadd [#allocation4], 0
      %s272 = sshll.u32 [#allocation5], 4
      %s273 = int_to_ptr.vmem [resolvable:$true] %s272
      %s274 = sshll.u32 %s3, 4
      %s275 = int_to_ptr.hbm [resolvable:$true] %s274
      %280 = dma.vmem_to_hbm [thread:$0]  %s273, 2048, %s275, [#allocation4], 256, 256, 16
    $region21: #{tpu_custom_call.1} parent=1 // pred_fallthru
      _
    // Predicated region
    $region22: #{tpu_custom_call.1} parent=1 // pred_check
      _
    $region23: #{tpu_custom_call.1} parent=1 // pred_check_branch
      %282 = sbr.rel (0) target = $region25
    $region24: #{tpu_custom_call.1} parent=1 // pred_region
      %284 = dma.done [#allocation4], 2048
    $region25: #{tpu_custom_call.1} parent=1 // pred_fallthru
      _
    %285 = vsyncpa [#allocation3], 1
    %286 = vsyncpa [#allocation4], 1

</llo_original>
